<compile_context>
chip_gen: v6e
topology: v6e:2x2x1
jax: 0.10.0
libtpu: 0.0.40
codegen_flags: <defaults>
</compile_context>

<pallas_src>
import functools

import jax
import jax.numpy as jnp
from jax.experimental import pallas as pl
from jax.experimental.pallas import tpu as pltpu


def _c2s_kernel(x_ref, s0_ref, s1_ref, o_ref, *, cb, H, W, reps):
    # x_ref : (4*cb, H, W)            -- one batch element, one channel block
    # s*_ref: (W, 2W)  one-hot lane (width) interleave selectors
    # o_ref : (reps, cb, H, 4W)       -- all channel repeats of this block;
    #          last dim = [even output row (2W) | odd output row (2W)]
    out_dtype = o_ref.dtype

    x4 = x_ref[...].reshape(cb, 4, H, W)        # channel split: 4c + (2i + j)
    s0 = s0_ref[...]                            # s0[w, 2w]   = 1
    s1 = s1_ref[...]                            # s1[w, 2w+1] = 1

    def width_interleave(k_even, k_odd):
        # result[c, h, 2w+j] = x4[c, k_j, h, w]  (exact one-hot selection,
        # exact in bf16 as well -> accumulate in the native dtype)
        a = x4[:, k_even].reshape(cb * H, W)
        b = x4[:, k_odd].reshape(cb * H, W)
        r = (jnp.dot(a, s0, preferred_element_type=out_dtype)
             + jnp.dot(b, s1, preferred_element_type=out_dtype))   # (cb*H, 2W)
        return r.reshape(cb, H, 2 * W)

    r0 = width_interleave(0, 1)   # i = 0 -> even output rows
    r1 = width_interleave(2, 3)   # i = 1 -> odd  output rows

    # Lane-dim concat: (cb, H, 4W).  The height interleave becomes a free
    # metadata reshape in the wrapper; no strided / masked sublane stores.
    y = jnp.concatenate([r0, r1], axis=-1)

    # Channel repeat: write the same dense slab to each repeat of this block.
    for r in range(reps):
        o_ref[r] = y


def _selectors(W, dtype):
    # Width interleave: s_j[w, 2w+j] = 1
    wi = jnp.arange(W)[:, None]
    wo = jnp.arange(2 * W)[None, :]
    s0 = (wo == 2 * wi).astype(dtype)
    s1 = (wo == 2 * wi + 1).astype(dtype)
    return s0, s1


def _budgets():
    """Return (out_block_budget_bytes, vmem_cap_bytes) per TPU generation."""
    out_budget, cap = 5 * 1024 * 1024, 48 * 1024 * 1024   # safe default (v7x-OK)
    try:
        info = pltpu.get_tpu_info()
        vmem = int(getattr(info, "vmem_capacity_bytes", 0) or 0)
        if vmem >= 96 * 1024 * 1024:
            # v5e / v6e: 128 MiB VMEM -> bigger blocks cut per-step overhead.
            out_budget, cap = 12 * 1024 * 1024, 100 * 1024 * 1024
        elif vmem > 0:
            # v7x: 64 MiB per TensorCore -> keep blocks small with headroom.
            out_budget, cap = 4 * 1024 * 1024, 48 * 1024 * 1024
    except Exception:
        pass
    return out_budget, cap


def channel_to_space(x, ch_in, ch_out):
    """Pallas implementation of ChannelToSpace.forward. x: (B, C, H, W), NCHW."""
    reps = 4 if ch_in == ch_out else 2
    B, C, H, W = x.shape
    assert C % 4 == 0, "pixel_shuffle(upscale_factor=2) requires C % 4 == 0"
    c_out = C // 4
    out_c = reps * c_out
    assert ch_out == out_c, (
        f"ch_out={ch_out} inconsistent with reps={reps} * C//4={c_out}")

    s0, s1 = _selectors(W, x.dtype)
    esize = jnp.dtype(x.dtype).itemsize

    # --- pick channel-block size cb (must divide c_out) ------------------
    out_budget, vmem_cap = _budgets()
    per_ch_out = reps * H * 4 * W * esize            # out bytes per channel of cb
    max_cb = max(1, out_budget // per_ch_out)
    cb = max(1, min(c_out, max_cb))
    while c_out % cb:
        cb -= 1
    # v7x has 2 TensorCores: make sure there are >= 2 grid steps when possible.
    if B * (c_out // cb) < 2 and c_out > 1:
        cb = max(1, c_out // 2)
        while c_out % cb:
            cb -= 1
    n_cblk = c_out // cb

    # --- VMEM limit derived from real buffer sizes ------------------------
    in_block = 4 * cb * H * W * esize
    out_block = reps * cb * H * 4 * W * esize
    sel_bytes = 2 * (W * 2 * W * esize)
    # 2x double-buffered DMA blocks + kernel live values (x4, r0, r1, y) + slack
    vmem_need = 2 * (in_block + out_block) + 4 * in_block + 2 * sel_bytes + (8 << 20)
    vmem_limit = int(min(vmem_cap, max(32 << 20, vmem_need)))

    kernel = functools.partial(_c2s_kernel, cb=cb, H=H, W=W, reps=reps)

    cost = pl.CostEstimate(
        flops=4 * B * C * H * W * W,          # tiny one-hot selection matmuls
        transcendentals=0,
        bytes_accessed=(1 + reps) * x.size * esize,
    )

    out = pl.pallas_call(
        kernel,
        out_shape=jax.ShapeDtypeStruct((B, reps, c_out, H, 4 * W), x.dtype),
        grid=(B, n_cblk),
        in_specs=[
            pl.BlockSpec((None, 4 * cb, H, W), lambda b, c: (b, c, 0, 0)),
            pl.BlockSpec((W, 2 * W), lambda b, c: (0, 0)),   # resident selectors
            pl.BlockSpec((W, 2 * W), lambda b, c: (0, 0)),
        ],
        out_specs=pl.BlockSpec((None, reps, cb, H, 4 * W),
                               lambda b, c: (b, 0, c, 0, 0)),
        compiler_params=pltpu.CompilerParams(
            dimension_semantics=("parallel", "parallel"),
            vmem_limit_bytes=vmem_limit,
        ),
        cost_estimate=cost,
    )(x, s0, s1)

    # (B, reps, c_out, H, 4W) -> (B, reps*c_out, 2H, 2W):
    # row-major order is identical, so this is a free metadata reshape
    # (the (H, [even|odd]) packing realizes the height interleave).
    return out.reshape(B, out_c, 2 * H, 2 * W)


def _reference(x, reps):
    # pure-JAX reference: pixel_shuffle(2) + channel tile
    B, C, H, W = x.shape
    c_out = C // 4
    y = x.reshape(B, c_out, 2, 2, H, W)
    y = jnp.transpose(y, (0, 1, 4, 2, 5, 3)).reshape(B, c_out, 2 * H, 2 * W)
    return jnp.tile(y, (1, reps, 1, 1))


if __name__ == "__main__":
    key = jax.random.PRNGKey(0)
    B, C, H, W = 2, 8, 16, 16
    x = jax.random.normal(key, (B, C, H, W), dtype=jnp.float32)

    # Case 1: ch_in == ch_out  -> reps = 4
    out4 = channel_to_space(x, ch_in=C, ch_out=C)
    jax.block_until_ready(out4)
    ref4 = _reference(x, reps=4)
    assert out4.shape == (B, C, 2 * H, 2 * W)
    assert jnp.allclose(out4, ref4, atol=1e-6, rtol=1e-6), "mismatch (reps=4)"

    # Case 2: ch_in != ch_out  -> reps = 2
    out2 = channel_to_space(x, ch_in=C, ch_out=C // 2)
    jax.block_until_ready(out2)
    ref2 = _reference(x, reps=2)
    assert out2.shape == (B, C // 2, 2 * H, 2 * W)
    assert jnp.allclose(out2, ref2, atol=1e-6, rtol=1e-6), "mismatch (reps=2)"

    # Native bf16 path (no f32 intermediates; one-hot selection is exact).
    xb = x.astype(jnp.bfloat16)
    outb = channel_to_space(xb, ch_in=C, ch_out=C)
    jax.block_until_ready(outb)
    refb = _reference(xb, reps=4)
    assert outb.dtype == jnp.bfloat16
    assert jnp.allclose(outb.astype(jnp.float32), refb.astype(jnp.float32)), \
        "mismatch (bf16)"

    # TODO(synk): integer-dtype activations would need a non-MXU interleave path
    # (v7x MXU has no integer mode); not required for this module.

    print("KERNEL_OK")
</pallas_src>

<mosaic_0001>
module attributes {stable_mosaic.version = 11 : i64} {
  func.func @_c2s_kernel(%arg0: i32, %arg1: i32, %arg2: memref<1x8x16x16xf32, #tpu.memory_space<vmem>>, %arg3: memref<16x32xf32, #tpu.memory_space<vmem>>, %arg4: memref<16x32xf32, #tpu.memory_space<vmem>>, %arg5: memref<1x4x2x16x64xf32, #tpu.memory_space<vmem>>) attributes {dimension_semantics = [#tpu.dimension_semantics<parallel>, #tpu.dimension_semantics<parallel>], iteration_bounds = array<i64: 2, 1>, scalar_prefetch = 0 : i64, scratch_operands = 0 : i64, tpu.core_type = #tpu.core_type<tc>, window_params = [{transform_indices = @transform_0, window_bounds = array<i64: 1, 8, 16, 16>}, {pipeline_mode = #tpu.pipeline_mode<synchronous>, transform_indices = @transform_1, window_bounds = array<i64: 16, 32>}, {pipeline_mode = #tpu.pipeline_mode<synchronous>, transform_indices = @transform_2, window_bounds = array<i64: 16, 32>}, {transform_indices = @transform_3, window_bounds = array<i64: 1, 4, 2, 16, 64>}]} {
    %c0 = arith.constant 0 : index
    %c0_0 = arith.constant 0 : index
    %c0_1 = arith.constant 0 : index
    %c0_2 = arith.constant 0 : index
    %0 = vector.load %arg2[%c0, %c0_0, %c0_1, %c0_2] : memref<1x8x16x16xf32, #tpu.memory_space<vmem>>, vector<1x8x16x16xf32>
    %1 = vector.shape_cast %0 : vector<1x8x16x16xf32> to vector<8x16x16xf32>
    %2 = vector.shape_cast %1 : vector<8x16x16xf32> to vector<2x4x16x16xf32>
    %c0_3 = arith.constant 0 : index
    %c0_4 = arith.constant 0 : index
    %3 = vector.load %arg3[%c0_3, %c0_4] : memref<16x32xf32, #tpu.memory_space<vmem>>, vector<16x32xf32>
    %c0_5 = arith.constant 0 : index
    %c0_6 = arith.constant 0 : index
    %4 = vector.load %arg4[%c0_5, %c0_6] : memref<16x32xf32, #tpu.memory_space<vmem>>, vector<16x32xf32>
    %5 = vector.extract_strided_slice %2 {offsets = [0, 0, 0, 0], sizes = [2, 1, 16, 16], strides = [1, 1, 1, 1]} : vector<2x4x16x16xf32> to vector<2x1x16x16xf32>
    %6 = vector.shape_cast %5 : vector<2x1x16x16xf32> to vector<2x16x16xf32>
    %7 = vector.shape_cast %6 : vector<2x16x16xf32> to vector<32x16xf32>
    %8 = vector.extract_strided_slice %2 {offsets = [0, 1, 0, 0], sizes = [2, 1, 16, 16], strides = [1, 1, 1, 1]} : vector<2x4x16x16xf32> to vector<2x1x16x16xf32>
    %9 = vector.shape_cast %8 : vector<2x1x16x16xf32> to vector<2x16x16xf32>
    %10 = vector.shape_cast %9 : vector<2x16x16xf32> to vector<32x16xf32>
    %cst = arith.constant dense<0.000000e+00> : vector<32x32xf32>
    %11 = tpu.matmul %7, %3, %cst {dimension_numbers = #tpu.dot_dimension_numbers<[1], [0], [0], [1], [0, 0, 1, 1], [], []>} : vector<32x16xf32>, vector<16x32xf32>, vector<32x32xf32> -> vector<32x32xf32>
    %cst_7 = arith.constant dense<0.000000e+00> : vector<32x32xf32>
    %12 = tpu.matmul %10, %4, %cst_7 {dimension_numbers = #tpu.dot_dimension_numbers<[1], [0], [0], [1], [0, 0, 1, 1], [], []>} : vector<32x16xf32>, vector<16x32xf32>, vector<32x32xf32> -> vector<32x32xf32>
    %13 = arith.addf %11, %12 : vector<32x32xf32>
    %14 = vector.shape_cast %13 : vector<32x32xf32> to vector<2x16x32xf32>
    %15 = vector.extract_strided_slice %2 {offsets = [0, 2, 0, 0], sizes = [2, 1, 16, 16], strides = [1, 1, 1, 1]} : vector<2x4x16x16xf32> to vector<2x1x16x16xf32>
    %16 = vector.shape_cast %15 : vector<2x1x16x16xf32> to vector<2x16x16xf32>
    %17 = vector.shape_cast %16 : vector<2x16x16xf32> to vector<32x16xf32>
    %18 = vector.extract_strided_slice %2 {offsets = [0, 3, 0, 0], sizes = [2, 1, 16, 16], strides = [1, 1, 1, 1]} : vector<2x4x16x16xf32> to vector<2x1x16x16xf32>
    %19 = vector.shape_cast %18 : vector<2x1x16x16xf32> to vector<2x16x16xf32>
    %20 = vector.shape_cast %19 : vector<2x16x16xf32> to vector<32x16xf32>
    %cst_8 = arith.constant dense<0.000000e+00> : vector<32x32xf32>
    %21 = tpu.matmul %17, %3, %cst_8 {dimension_numbers = #tpu.dot_dimension_numbers<[1], [0], [0], [1], [0, 0, 1, 1], [], []>} : vector<32x16xf32>, vector<16x32xf32>, vector<32x32xf32> -> vector<32x32xf32>
    %cst_9 = arith.constant dense<0.000000e+00> : vector<32x32xf32>
    %22 = tpu.matmul %20, %4, %cst_9 {dimension_numbers = #tpu.dot_dimension_numbers<[1], [0], [0], [1], [0, 0, 1, 1], [], []>} : vector<32x16xf32>, vector<16x32xf32>, vector<32x32xf32> -> vector<32x32xf32>
    %23 = arith.addf %21, %22 : vector<32x32xf32>
    %24 = vector.shape_cast %23 : vector<32x32xf32> to vector<2x16x32xf32>
    %25 = tpu.concatenate %14, %24 in 2 : vector<2x16x32xf32>, vector<2x16x32xf32> -> vector<2x16x64xf32>
    %c0_10 = arith.constant 0 : index
    %c0_11 = arith.constant 0 : index
    %c0_12 = arith.constant 0 : index
    %c0_13 = arith.constant 0 : index
    %c0_14 = arith.constant 0 : index
    %26 = vector.load %arg5[%c0_10, %c0_11, %c0_12, %c0_13, %c0_14] : memref<1x4x2x16x64xf32, #tpu.memory_space<vmem>>, vector<1x1x2x16x64xf32>
    %27 = vector.shape_cast %26 : vector<1x1x2x16x64xf32> to vector<2x16x64xf32>
    %28 = vector.shape_cast %25 : vector<2x16x64xf32> to vector<1x1x2x16x64xf32>
    tpu.vector_store %arg5[%c0_10, %c0_11, %c0_12, %c0_13, %c0_14], %28 {strides = array<i32>} : memref<1x4x2x16x64xf32, #tpu.memory_space<vmem>>, vector<1x1x2x16x64xf32>,
    %c0_15 = arith.constant 0 : index
    %c1 = arith.constant 1 : index
    %c0_16 = arith.constant 0 : index
    %c0_17 = arith.constant 0 : index
    %c0_18 = arith.constant 0 : index
    %29 = vector.load %arg5[%c0_15, %c1, %c0_16, %c0_17, %c0_18] : memref<1x4x2x16x64xf32, #tpu.memory_space<vmem>>, vector<1x1x2x16x64xf32>
    %30 = vector.shape_cast %29 : vector<1x1x2x16x64xf32> to vector<2x16x64xf32>
    %31 = vector.shape_cast %25 : vector<2x16x64xf32> to vector<1x1x2x16x64xf32>
    tpu.vector_store %arg5[%c0_15, %c1, %c0_16, %c0_17, %c0_18], %31 {strides = array<i32>} : memref<1x4x2x16x64xf32, #tpu.memory_space<vmem>>, vector<1x1x2x16x64xf32>,
    %c0_19 = arith.constant 0 : index
    %c2 = arith.constant 2 : index
    %c0_20 = arith.constant 0 : index
    %c0_21 = arith.constant 0 : index
    %c0_22 = arith.constant 0 : index
    %32 = vector.load %arg5[%c0_19, %c2, %c0_20, %c0_21, %c0_22] : memref<1x4x2x16x64xf32, #tpu.memory_space<vmem>>, vector<1x1x2x16x64xf32>
    %33 = vector.shape_cast %32 : vector<1x1x2x16x64xf32> to vector<2x16x64xf32>
    %34 = vector.shape_cast %25 : vector<2x16x64xf32> to vector<1x1x2x16x64xf32>
    tpu.vector_store %arg5[%c0_19, %c2, %c0_20, %c0_21, %c0_22], %34 {strides = array<i32>} : memref<1x4x2x16x64xf32, #tpu.memory_space<vmem>>, vector<1x1x2x16x64xf32>,
    %c0_23 = arith.constant 0 : index
    %c3 = arith.constant 3 : index
    %c0_24 = arith.constant 0 : index
    %c0_25 = arith.constant 0 : index
    %c0_26 = arith.constant 0 : index
    %35 = vector.load %arg5[%c0_23, %c3, %c0_24, %c0_25, %c0_26] : memref<1x4x2x16x64xf32, #tpu.memory_space<vmem>>, vector<1x1x2x16x64xf32>
    %36 = vector.shape_cast %35 : vector<1x1x2x16x64xf32> to vector<2x16x64xf32>
    %37 = vector.shape_cast %25 : vector<2x16x64xf32> to vector<1x1x2x16x64xf32>
    tpu.vector_store %arg5[%c0_23, %c3, %c0_24, %c0_25, %c0_26], %37 {strides = array<i32>} : memref<1x4x2x16x64xf32, #tpu.memory_space<vmem>>, vector<1x1x2x16x64xf32>,
    return
  }
  func.func @transform_0(%arg0: i32, %arg1: i32) -> (i32, i32, i32, i32) {
    %c0_i32 = arith.constant 0 : i32
    %c0_i32_0 = arith.constant 0 : i32
    %c0_i32_1 = arith.constant 0 : i32
    return %arg0, %arg1, %c0_i32, %c0_i32_0 : i32, i32, i32, i32
  }
  func.func @transform_1(%arg0: i32, %arg1: i32) -> (i32, i32) {
    %c0_i32 = arith.constant 0 : i32
    %c0_i32_0 = arith.constant 0 : i32
    %c0_i32_1 = arith.constant 0 : i32
    return %c0_i32, %c0_i32_0 : i32, i32
  }
  func.func @transform_2(%arg0: i32, %arg1: i32) -> (i32, i32) {
    %c0_i32 = arith.constant 0 : i32
    %c0_i32_0 = arith.constant 0 : i32
    %c0_i32_1 = arith.constant 0 : i32
    return %c0_i32, %c0_i32_0 : i32, i32
  }
  func.func @transform_3(%arg0: i32, %arg1: i32) -> (i32, i32, i32, i32, i32) {
    %c0_i32 = arith.constant 0 : i32
    %c0_i32_0 = arith.constant 0 : i32
    %c0_i32_1 = arith.constant 0 : i32
    %c0_i32_2 = arith.constant 0 : i32
    return %arg0, %c0_i32, %arg1, %c0_i32_0, %c0_i32_1 : i32, i32, i32, i32, i32
  }
}

</mosaic_0001>

<llo_original>
// kernel: tpu_custom_call.1
$region0: #{tpu_custom_call.1}
  #allocation0 [shape = 'u32[]', space=smem, size = 0x4, offset = 0x4, fixed_abs, tag = 'smem constant byte address 0x4 - core index']
  #allocation1 [shape = 'u32[144,128]{1,0:T(1,128)}', space=vmem, size = 0x12000, scoped, tag = 'internal scratch']
  %s0 = inlined_call_operand.hbm [shape: f32[2,8,16,16], index: 0, kind: input, shape index: {}]
  %s1 = inlined_call_operand.hbm [shape: f32[16,32], index: 1, kind: input, shape index: {}]
  %s2 = inlined_call_operand.hbm [shape: f32[16,32], index: 2, kind: input, shape index: {}]
  %s3 = inlined_call_operand.hbm [shape: f32[2,4,2,16,64], index: 3, kind: output, shape index: {}]
  %s4 = sld [smem:[#allocation0]]
  $region57: #{tpu_custom_call.1} parent=0
    _
  %s6 = ssub.s32 1, %s4
  %s7 = scalar_select 0, %s6, %s4
  $region1: #{tpu_custom_call.1} parent=0
    #allocation2 [shape = 'u8[131072]{0}', space=vmem, size = 0x20000, scoped, tag = 'input window, operand 0']
    #allocation3 [shape = 's32[2]{0}', space=sflag, size = 0x8, scoped, tag = 'scoped memory for tpu_custom_call.1']
    #allocation4 [shape = 's32[2]{0}', space=sflag, size = 0x8, scoped, tag = 'scoped memory for tpu_custom_call.1']
    #allocation5 [shape = 'u8[8192]{0}', space=vmem, size = 0x2000, scoped, tag = 'input window, operand 1, single buffered']
    #allocation6 [shape = 's32[1]{0}', space=sflag, size = 0x4, scoped, tag = 'scoped memory for tpu_custom_call.1']
    #allocation7 [shape = 'u8[8192]{0}', space=vmem, size = 0x2000, scoped, tag = 'input window, operand 2, single buffered']
    #allocation8 [shape = 'u8[131072]{0}', space=vmem, size = 0x20000, scoped, tag = 'output window, operand 0']
    %8 = vsyncpa [#allocation3], 0
    %s9 = scalar_lea.sflag [#allocation3], 1
    %10 = vsyncpa %s9, 0
    %11 = vsyncpa [#allocation6], 0
    %12 = vsyncpa [#allocation4], 0
    %s13 = scalar_lea.sflag [#allocation4], 1
    %14 = vsyncpa %s13, 0
    loop: start=0, step=1, limit=4
    $region2: #{tpu_custom_call.1} parent=1 // loop_pre_header
      _
    $region3: #{tpu_custom_call.1} parent=1 // loop_header
      %s16 = sphi 0, %s20
      %p17 = scmp.ge.s32.totalorder %s16, 4
      %s23 = sphi 0, %s35
      %s24 = sphi 0, %s31
      %s25 = sphi 0, %s23
      %s26 = sphi 0, %s24
      %s27 = sphi 0, %s25
      %s28 = sphi 0, %s26
      %s40 = sphi 0, %s42
      %s43 = sphi 0, %s40
      %s44 = sphi 0, %s43
      %s60 = sphi 0, %s44
      %s64 = sphi 0, %s64
      %s66 = sphi 0, %s64
      %s67 = sphi 0, %s66
      %s81 = sphi 0, %s67
      %s85 = sphi 0, %s85
      %s87 = sphi 0, %s85
      %s88 = sphi 0, %s87
      %s102 = sphi 0, %s88
      %s110 = sphi 0, %s112
      %s113 = sphi 0, %s110
      %s114 = sphi 0, %s113
      %s130 = sphi 0, %s114
    $region4: #{tpu_custom_call.1} parent=1 // loop_header_branch
      %19 = sbr.rel (%p17) target = $region8
    $region5: #{tpu_custom_call.1} parent=1 // loop_body
      %s21 = ssub.s32 %s16, 1
      %s22 = ssub.s32 %s16, 2
      %s29 = sadd.s32 1, %s24
      %p30 = scmp.ge.s32.totalorder %s29, 1
      %s31 = scalar_select %p30, 0, %s29
      %s32 = sadd.s32 1, %s23
      %s33 = scalar_select %p30, %s32, %s23
      %p34 = scmp.ge.s32.totalorder %s33, 2
      %s35 = scalar_select %p34, 0, %s33
      %s36 = ssub.s32 %s23, %s35
      %s37 = ssub.s32 %s24, %s31
      %s38 = sor.u32 %s36, %s37
      %p39 = scmp.eq.s32.totalorder %s38, 0
      %s41 = sadd.s32 %s40, 1
      %s42 = scalar_select %p39, %s40, %s41
      %p45 = pneg %p39
      %p46 = scmp.eq.s32.totalorder %s16, 1
      %p47 = por %p45, %p46
      %p48 = scmp.ne.s32.totalorder %s40, %s43
      %p49 = scmp.eq.s32.totalorder %s16, 0
      %p50 = por %p48, %p49
      %p51 = scmp.ne.s32.totalorder %s40, %s43
      %p52 = scmp.eq.s32.totalorder %s21, 1
      %p53 = por %p51, %p52
      %p54 = scmp.ne.s32.totalorder %s43, %s44
      %p55 = scmp.eq.s32.totalorder %s21, 0
      %p56 = por %p54, %p55
      %p57 = scmp.ne.s32.totalorder %s43, %s44
      %p58 = scmp.eq.s32.totalorder %s22, 1
      %p59 = por %p57, %p58
      %p61 = scmp.ne.s32.totalorder %s44, %s60
      %p62 = scmp.eq.s32.totalorder %s22, 0
      %p63 = por %p61, %p62
      %s65 = sadd.s32 %s64, 1
      %p68 = scmp.eq.s32.totalorder %s16, 1
      %p69 = scmp.ne.s32.totalorder %s64, %s66
      %p70 = scmp.eq.s32.totalorder %s16, 0
      %p71 = por %p69, %p70
      %p72 = scmp.ne.s32.totalorder %s64, %s66
      %p73 = scmp.eq.s32.totalorder %s21, 1
      %p74 = por %p72, %p73
      %p75 = scmp.ne.s32.totalorder %s66, %s67
      %p76 = scmp.eq.s32.totalorder %s21, 0
      %p77 = por %p75, %p76
      %p78 = scmp.ne.s32.totalorder %s66, %s67
      %p79 = scmp.eq.s32.totalorder %s22, 1
      %p80 = por %p78, %p79
      %p82 = scmp.ne.s32.totalorder %s67, %s81
      %p83 = scmp.eq.s32.totalorder %s22, 0
      %p84 = por %p82, %p83
      %s86 = sadd.s32 %s85, 1
      %p89 = scmp.eq.s32.totalorder %s16, 1
      %p90 = scmp.ne.s32.totalorder %s85, %s87
      %p91 = scmp.eq.s32.totalorder %s16, 0
      %p92 = por %p90, %p91
      %p93 = scmp.ne.s32.totalorder %s85, %s87
      %p94 = scmp.eq.s32.totalorder %s21, 1
      %p95 = por %p93, %p94
      %p96 = scmp.ne.s32.totalorder %s87, %s88
      %p97 = scmp.eq.s32.totalorder %s21, 0
      %p98 = por %p96, %p97
      %p99 = scmp.ne.s32.totalorder %s87, %s88
      %p100 = scmp.eq.s32.totalorder %s22, 1
      %p101 = por %p99, %p100
      %p103 = scmp.ne.s32.totalorder %s88, %s102
      %p104 = scmp.eq.s32.totalorder %s22, 0
      %p105 = por %p103, %p104
      %s106 = ssub.s32 %s23, %s35
      %s107 = ssub.s32 %s24, %s31
      %s108 = sor.u32 %s106, %s107
      %p109 = scmp.eq.s32.totalorder %s108, 0
      %s111 = sadd.s32 %s110, 1
      %s112 = scalar_select %p109, %s110, %s111
      %p115 = pneg %p109
      %p116 = scmp.eq.s32.totalorder %s16, 1
      %p117 = por %p115, %p116
      %p118 = scmp.ne.s32.totalorder %s110, %s113
      %p119 = scmp.eq.s32.totalorder %s16, 0
      %p120 = por %p118, %p119
      %p121 = scmp.ne.s32.totalorder %s110, %s113
      %p122 = scmp.eq.s32.totalorder %s21, 1
      %p123 = por %p121, %p122
      %p124 = scmp.ne.s32.totalorder %s113, %s114
      %p125 = scmp.eq.s32.totalorder %s21, 0
      %p126 = por %p124, %p125
      %p127 = scmp.ne.s32.totalorder %s113, %s114
      %p128 = scmp.eq.s32.totalorder %s22, 1
      %p129 = por %p127, %p128
      %p131 = scmp.ne.s32.totalorder %s114, %s130
      %p132 = scmp.eq.s32.totalorder %s22, 0
      %p133 = por %p131, %p132
      %p134 = scmp.le.s32.totalorder 1, %s16
      %p135 = scmp.lt.s32.totalorder %s16, 3
      %p136 = pnand %p134, %p135
      %p137 = pneg %p136
      // Predicated region
      $region9: #{tpu_custom_call.1} parent=5 // pred_check
        _
      $region10: #{tpu_custom_call.1} parent=5 // pred_check_branch
        %139 = sbr.rel (%p136) target = $region12
      $region11: #{tpu_custom_call.1} parent=5 // pred_region
        %s140 = ssub.s32 %s16, 1
        // Predicated region
        $region13: #{tpu_custom_call.1} parent=11 // pred_check
          %p141 = pneg %p77
        $region14: #{tpu_custom_call.1} parent=11 // pred_check_branch
          %143 = sbr.rel (%p141) target = $region16
        $region15: #{tpu_custom_call.1} parent=11 // pred_region
          %s145 = ssub.s32 256, 256
          %146 = vsyncadd [#allocation6], %s145
          %s147 = sshll.u32 [#allocation5], 4
          %s148 = int_to_ptr.vmem [resolvable:$true] %s147
          %153 = dma.hbm_to_vmem [thread:$0]  %s1, 256, %s148, [#allocation6], 128, 128, 8
        $region16: #{tpu_custom_call.1} parent=11 // pred_fallthru
          _
        // Predicated region
        $region17: #{tpu_custom_call.1} parent=11 // pred_check
          %p154 = pneg %p98
        $region18: #{tpu_custom_call.1} parent=11 // pred_check_branch
          %156 = sbr.rel (%p154) target = $region20
        $region19: #{tpu_custom_call.1} parent=11 // pred_region
          %s158 = ssub.s32 256, 256
          %159 = vsyncadd [#allocation6], %s158
          %s160 = sshll.u32 [#allocation7], 4
          %s161 = int_to_ptr.vmem [resolvable:$true] %s160
          %166 = dma.hbm_to_vmem [thread:$0]  %s2, 256, %s161, [#allocation6], 128, 128, 8
        $region20: #{tpu_custom_call.1} parent=11 // pred_fallthru
          _
      $region12: #{tpu_custom_call.1} parent=5 // pred_fallthru
        _
      %p167 = scmp.lt.s32.totalorder %s16, 2
      // Predicated region
      $region21: #{tpu_custom_call.1} parent=5 // pred_check
        %p168 = pneg %p167
      $region22: #{tpu_custom_call.1} parent=5 // pred_check_branch
        %170 = sbr.rel (%p168) target = $region24
      $region23: #{tpu_custom_call.1} parent=5 // pred_region
        // Predicated region
        $region25: #{tpu_custom_call.1} parent=23 // pred_check
          %p171 = pneg %p50
        $region26: #{tpu_custom_call.1} parent=23 // pred_check_branch
          %173 = sbr.rel (%p171) target = $region28
        $region27: #{tpu_custom_call.1} parent=23 // pred_region
          %s174 = sand.u32 %s40, 1
          %s175 = scalar_lea.sflag [#allocation3], %s174
          %s176 = sand.u32 %s40, 1
          %s177 = smul.addr %s176, 128
          %s178 = scalar_lea.vmem [#allocation2], %s177
          %s179 = smul.u32 8, %s24
          %s181 = ssub.s32 2048, 2048
          %182 = vsyncadd %s175, %s181
          %s183 = smul.addr %s179, 2
          %s184 = smul.addr %s23, 16
          %s185 = sadd.s32 %s183, %s184
          %s186 = smul.addr %s185, 128
          %s187 = scalar_lea.hbm %s0, %s186
          %s188 = sshll.u32 %s178, 4
          %s189 = int_to_ptr.vmem [resolvable:$true] %s188
          %194 = dma.hbm_to_vmem [thread:$0]  %s187, 2048, %s189, %s175, 128, 128, 8
        $region28: #{tpu_custom_call.1} parent=23 // pred_fallthru
          _
      $region24: #{tpu_custom_call.1} parent=5 // pred_fallthru
        _
      %p195 = scmp.le.s32.totalorder 1, %s16
      %p196 = scmp.lt.s32.totalorder %s16, 3
      %p197 = pnand %p195, %p196
      %p198 = pneg %p197
      // Predicated region
      $region29: #{tpu_custom_call.1} parent=5 // pred_check
        _
      $region30: #{tpu_custom_call.1} parent=5 // pred_check_branch
        %200 = sbr.rel (%p197) target = $region32
      $region31: #{tpu_custom_call.1} parent=5 // pred_region
        %s201 = ssub.s32 %s16, 1
        %s202 = sand.u32 %s43, 1
        %s203 = scalar_lea.sflag [#allocation3], %s202
        %s204 = sand.u32 %s43, 1
        %s205 = smul.addr %s204, 128
        %s206 = scalar_lea.vmem [#allocation2], %s205
        // Predicated region
        $region33: #{tpu_custom_call.1} parent=31 // pred_check
          %p207 = pneg %p56
        $region34: #{tpu_custom_call.1} parent=31 // pred_check_branch
          %209 = sbr.rel (%p207) target = $region36
        $region35: #{tpu_custom_call.1} parent=31 // pred_region
          %210 = dma.done %s203, 2048
        $region36: #{tpu_custom_call.1} parent=31 // pred_fallthru
          _
        // Predicated region
        $region37: #{tpu_custom_call.1} parent=31 // pred_check
          %p211 = pneg %p77
        $region38: #{tpu_custom_call.1} parent=31 // pred_check_branch
          %213 = sbr.rel (%p211) target = $region40
        $region39: #{tpu_custom_call.1} parent=31 // pred_region
          %214 = dma.done [#allocation6], 256
        $region40: #{tpu_custom_call.1} parent=31 // pred_fallthru
          _
        // Predicated region
        $region41: #{tpu_custom_call.1} parent=31 // pred_check
          %p215 = pneg %p98
        $region42: #{tpu_custom_call.1} parent=31 // pred_check_branch
          %217 = sbr.rel (%p215) target = $region44
        $region43: #{tpu_custom_call.1} parent=31 // pred_region
          %218 = dma.done [#allocation6], 256
        $region44: #{tpu_custom_call.1} parent=31 // pred_fallthru
          _
        %s219 = sand.u32 %s43, 1
        %s220 = scalar_lea.sflag [#allocation3], %s219
        %s221 = sand.u32 %s43, 1
        %s222 = smul.addr %s221, 128
        %s223 = scalar_lea.vmem [#allocation2], %s222
        %p224 = pneg %p56
        %p225 = pneg %p53
        %p226 = pneg %p77
        %p227 = pneg %p74
        %p228 = pneg %p98
        %p229 = pneg %p95
        %p230 = pneg %p126
        %p231 = pneg %p123
        %s232 = sand.u32 %s113, 1
        %s233 = scalar_lea.sflag [#allocation4], %s232
        %s234 = sand.u32 %s113, 1
        %s235 = smul.addr %s234, 128
        %s236 = scalar_lea.vmem [#allocation8], %s235
        %s237 = smul.u32 8, %s26
        %s238 = smul.u32 2, %s26
        %v239 = vld [vmem:[%s206] sm:$0xff]
        %v240 = vld [vmem:[%s206 + $0x8] sm:$0xff]
        %v241 = vld [vmem:[%s206 + $0x10] sm:$0xff]
        %v242 = vld [vmem:[%s206 + $0x18] sm:$0xff]
        %v243 = vld [vmem:[%s206 + $0x20] sm:$0xff]
        %v244 = vld [vmem:[%s206 + $0x28] sm:$0xff]
        %v245 = vld [vmem:[%s206 + $0x30] sm:$0xff]
        %v246 = vld [vmem:[%s206 + $0x38] sm:$0xff]
        %v247 = vld [vmem:[%s206 + $0x40] sm:$0xff]
        %v248 = vld [vmem:[%s206 + $0x48] sm:$0xff]
        %v249 = vld [vmem:[%s206 + $0x50] sm:$0xff]
        %v250 = vld [vmem:[%s206 + $0x58] sm:$0xff]
        %v251 = vld [vmem:[%s206 + $0x60] sm:$0xff]
        %v252 = vld [vmem:[%s206 + $0x68] sm:$0xff]
        %v253 = vld [vmem:[%s206 + $0x70] sm:$0xff]
        %v254 = vld [vmem:[%s206 + $0x78] sm:$0xff]
        %v255 = vld [vmem:[#allocation5] sm:$0xff]
        %v256 = vld [vmem:[#allocation5 + $0x8] sm:$0xff]
        %v257 = vld [vmem:[#allocation7] sm:$0xff]
        %v258 = vld [vmem:[#allocation7 + $0x8] sm:$0xff]
        %vm259 = vcmask 130048
        %v261 = vsel %vm259, %v241, 0
        %v264 = vsel %vm259, %v242, 0
        %v267 = vsel %vm259, %v249, 0
        %v270 = vsel %vm259, %v250, 0
        %272 = vmatprep.subr.mxu0 0.0
        %273 = vmatpush1.msra.mxu0 0.0
        %274 = vmatprep.subr.mxu0 0.0
        %275 = vmatpush1.msra.mxu0 0.0
        %276 = vmatprep.subr.mxu0 0.0
        %277 = vmatpush1.msra.mxu0 0.0
        %278 = vmatprep.subr.mxu0 0.0
        %279 = vmatpush1.msra.mxu0 0.0
        %280 = vmatprep.subr.mxu0 0.0
        %281 = vmatpush1.msra.mxu0 0.0
        %282 = vmatprep.subr.mxu0 0.0
        %283 = vmatpush1.msra.mxu0 0.0
        %284 = vmatprep.subr.mxu0 0.0
        %285 = vmatpush1.msra.mxu0 0.0
        %286 = vmatprep.subr.mxu0 0.0
        %287 = vmatpush1.msra.mxu0 0.0
        %288 = vmatprep.subr.mxu0 0.0
        %289 = vmatpush1.msra.mxu0 0.0
        %290 = vmatprep.subr.mxu0 0.0
        %291 = vmatpush1.msra.mxu0 0.0
        %292 = vmatprep.subr.mxu0 0.0
        %293 = vmatpush1.msra.mxu0 0.0
        %294 = vmatprep.subr.mxu0 0.0
        %295 = vmatpush1.msra.mxu0 0.0
        %296 = vmatprep.subr.mxu0 0.0
        %297 = vmatpush1.msra.mxu0 0.0
        %298 = vmatprep.subr.mxu0 0.0
        %299 = vmatpush1.msra.mxu0 0.0
        %300 = vmatprep.subr.mxu0 0.0
        %301 = vmatpush1.msra.mxu0 %v258
        %302 = vmatprep.subr.mxu0 0.0
        %303 = vmatpush1.msra.mxu0 %v257
        %304 = vmatprep.subr.mxu0 0.0
        %305 = vmatpush2.msra.mxu0 0.0
        %306 = vmatprep.subr.mxu0 0.0
        %307 = vmatpush2.msra.mxu0 0.0
        %308 = vmatprep.subr.mxu0 0.0
        %309 = vmatpush2.msra.mxu0 0.0
        %310 = vmatprep.subr.mxu0 0.0
        %311 = vmatpush2.msra.mxu0 0.0
        %312 = vmatprep.subr.mxu0 0.0
        %313 = vmatpush2.msra.mxu0 0.0
        %314 = vmatprep.subr.mxu0 0.0
        %315 = vmatpush2.msra.mxu0 0.0
        %316 = vmatprep.subr.mxu0 0.0
        %317 = vmatpush2.msra.mxu0 0.0
        %318 = vmatprep.subr.mxu0 0.0
        %319 = vmatpush2.msra.mxu0 0.0
        %320 = vmatprep.subr.mxu0 0.0
        %321 = vmatpush2.msra.mxu0 0.0
        %322 = vmatprep.subr.mxu0 0.0
        %323 = vmatpush2.msra.mxu0 0.0
        %324 = vmatprep.subr.mxu0 0.0
        %325 = vmatpush2.msra.mxu0 0.0
        %326 = vmatprep.subr.mxu0 0.0
        %327 = vmatpush2.msra.mxu0 0.0
        %328 = vmatprep.subr.mxu0 0.0
        %329 = vmatpush2.msra.mxu0 0.0
        %330 = vmatprep.subr.mxu0 0.0
        %331 = vmatpush2.msra.mxu0 0.0
        %332 = vmatprep.subr.mxu0 0.0
        %333 = vmatpush2.msra.mxu0 0.0
        %334 = vmatprep.subr.mxu0 0.0
        %335 = vmatpush2.msra.mxu0 0.0
        %336 = vmatprep.mubr.f32.mxu0 0.0
        %337 = vmatmul.mubr.f32.gmra.mxu0 %v261
        %v338 = vpop.f32.mrf.mxu0
        %v339 = vadd.f32 0.0, %v338
        %v340 = vpop.f32.mrf.mxu0
        %341 = vmatprep.mubr.f32.mxu0 0.0
        %342 = vmatmul.mubr.f32.gmra.mxu0 %v264
        %v343 = vpop.f32.mrf.mxu0
        %v344 = vadd.f32 0.0, %v343
        %v345 = vpop.f32.mrf.mxu0
        %346 = vmatprep.mubr.f32.mxu0 0.0
        %347 = vmatmul.mubr.f32.gmra.mxu0 %v267
        %v348 = vpop.f32.mrf.mxu0
        %v349 = vadd.f32 0.0, %v348
        %v350 = vpop.f32.mrf.mxu0
        %351 = vmatprep.mubr.f32.mxu0 0.0
        %352 = vmatmul.mubr.f32.gmra.mxu0 %v270
        %v353 = vpop.f32.mrf.mxu0
        %v354 = vadd.f32 0.0, %v353
        %v355 = vpop.f32.mrf.mxu0
        %356 = vdwg.mxu0
        %v358 = vsel %vm259, %v239, 0
        %v361 = vsel %vm259, %v240, 0
        %v364 = vsel %vm259, %v247, 0
        %v367 = vsel %vm259, %v248, 0
        %369 = vmatprep.subr.mxu0 0.0
        %370 = vmatpush1.msra.mxu0 0.0
        %371 = vmatprep.subr.mxu0 0.0
        %372 = vmatpush1.msra.mxu0 0.0
        %373 = vmatprep.subr.mxu0 0.0
        %374 = vmatpush1.msra.mxu0 0.0
        %375 = vmatprep.subr.mxu0 0.0
        %376 = vmatpush1.msra.mxu0 0.0
        %377 = vmatprep.subr.mxu0 0.0
        %378 = vmatpush1.msra.mxu0 0.0
        %379 = vmatprep.subr.mxu0 0.0
        %380 = vmatpush1.msra.mxu0 0.0
        %381 = vmatprep.subr.mxu0 0.0
        %382 = vmatpush1.msra.mxu0 0.0
        %383 = vmatprep.subr.mxu0 0.0
        %384 = vmatpush1.msra.mxu0 0.0
        %385 = vmatprep.subr.mxu0 0.0
        %386 = vmatpush1.msra.mxu0 0.0
        %387 = vmatprep.subr.mxu0 0.0
        %388 = vmatpush1.msra.mxu0 0.0
        %389 = vmatprep.subr.mxu0 0.0
        %390 = vmatpush1.msra.mxu0 0.0
        %391 = vmatprep.subr.mxu0 0.0
        %392 = vmatpush1.msra.mxu0 0.0
        %393 = vmatprep.subr.mxu0 0.0
        %394 = vmatpush1.msra.mxu0 0.0
        %395 = vmatprep.subr.mxu0 0.0
        %396 = vmatpush1.msra.mxu0 0.0
        %397 = vmatprep.subr.mxu0 0.0
        %398 = vmatpush1.msra.mxu0 %v256
        %399 = vmatprep.subr.mxu0 0.0
        %400 = vmatpush1.msra.mxu0 %v255
        %401 = vmatprep.subr.mxu0 0.0
        %402 = vmatpush2.msra.mxu0 0.0
        %403 = vmatprep.subr.mxu0 0.0
        %404 = vmatpush2.msra.mxu0 0.0
        %405 = vmatprep.subr.mxu0 0.0
        %406 = vmatpush2.msra.mxu0 0.0
        %407 = vmatprep.subr.mxu0 0.0
        %408 = vmatpush2.msra.mxu0 0.0
        %409 = vmatprep.subr.mxu0 0.0
        %410 = vmatpush2.msra.mxu0 0.0
        %411 = vmatprep.subr.mxu0 0.0
        %412 = vmatpush2.msra.mxu0 0.0
        %413 = vmatprep.subr.mxu0 0.0
        %414 = vmatpush2.msra.mxu0 0.0
        %415 = vmatprep.subr.mxu0 0.0
        %416 = vmatpush2.msra.mxu0 0.0
        %417 = vmatprep.subr.mxu0 0.0
        %418 = vmatpush2.msra.mxu0 0.0
        %419 = vmatprep.subr.mxu0 0.0
        %420 = vmatpush2.msra.mxu0 0.0
        %421 = vmatprep.subr.mxu0 0.0
        %422 = vmatpush2.msra.mxu0 0.0
        %423 = vmatprep.subr.mxu0 0.0
        %424 = vmatpush2.msra.mxu0 0.0
        %425 = vmatprep.subr.mxu0 0.0
        %426 = vmatpush2.msra.mxu0 0.0
        %427 = vmatprep.subr.mxu0 0.0
        %428 = vmatpush2.msra.mxu0 0.0
        %429 = vmatprep.subr.mxu0 0.0
        %430 = vmatpush2.msra.mxu0 0.0
        %431 = vmatprep.subr.mxu0 0.0
        %432 = vmatpush2.msra.mxu0 0.0
        %433 = vmatprep.mubr.f32.mxu0 0.0
        %434 = vmatmul.mubr.f32.gmra.mxu0 %v358
        %v435 = vpop.f32.mrf.mxu0
        %v436 = vadd.f32 %v339, %v435
        %v437 = vpop.f32.mrf.mxu0
        %438 = vmatprep.mubr.f32.mxu0 0.0
        %439 = vmatmul.mubr.f32.gmra.mxu0 %v361
        %v440 = vpop.f32.mrf.mxu0
        %v441 = vadd.f32 %v344, %v440
        %v442 = vpop.f32.mrf.mxu0
        %443 = vmatprep.mubr.f32.mxu0 0.0
        %444 = vmatmul.mubr.f32.gmra.mxu0 %v364
        %v445 = vpop.f32.mrf.mxu0
        %v446 = vadd.f32 %v349, %v445
        %v447 = vpop.f32.mrf.mxu0
        %448 = vmatprep.mubr.f32.mxu0 0.0
        %449 = vmatmul.mubr.f32.gmra.mxu0 %v367
        %v450 = vpop.f32.mrf.mxu0
        %v451 = vadd.f32 %v354, %v450
        %v452 = vpop.f32.mrf.mxu0
        %453 = vdwg.mxu0
        %v455 = vsel %vm259, %v245, 0
        %v458 = vsel %vm259, %v246, 0
        %v461 = vsel %vm259, %v253, 0
        %v464 = vsel %vm259, %v254, 0
        %466 = vmatprep.subr.mxu0 0.0
        %467 = vmatpush1.msra.mxu0 0.0
        %468 = vmatprep.subr.mxu0 0.0
        %469 = vmatpush1.msra.mxu0 0.0
        %470 = vmatprep.subr.mxu0 0.0
        %471 = vmatpush1.msra.mxu0 0.0
        %472 = vmatprep.subr.mxu0 0.0
        %473 = vmatpush1.msra.mxu0 0.0
        %474 = vmatprep.subr.mxu0 0.0
        %475 = vmatpush1.msra.mxu0 0.0
        %476 = vmatprep.subr.mxu0 0.0
        %477 = vmatpush1.msra.mxu0 0.0
        %478 = vmatprep.subr.mxu0 0.0
        %479 = vmatpush1.msra.mxu0 0.0
        %480 = vmatprep.subr.mxu0 0.0
        %481 = vmatpush1.msra.mxu0 0.0
        %482 = vmatprep.subr.mxu0 0.0
        %483 = vmatpush1.msra.mxu0 0.0
        %484 = vmatprep.subr.mxu0 0.0
        %485 = vmatpush1.msra.mxu0 0.0
        %486 = vmatprep.subr.mxu0 0.0
        %487 = vmatpush1.msra.mxu0 0.0
        %488 = vmatprep.subr.mxu0 0.0
        %489 = vmatpush1.msra.mxu0 0.0
        %490 = vmatprep.subr.mxu0 0.0
        %491 = vmatpush1.msra.mxu0 0.0
        %492 = vmatprep.subr.mxu0 0.0
        %493 = vmatpush1.msra.mxu0 0.0
        %494 = vmatprep.subr.mxu0 0.0
        %495 = vmatpush1.msra.mxu0 %v258
        %496 = vmatprep.subr.mxu0 0.0
        %497 = vmatpush1.msra.mxu0 %v257
        %498 = vmatprep.subr.mxu0 0.0
        %499 = vmatpush2.msra.mxu0 0.0
        %500 = vmatprep.subr.mxu0 0.0
        %501 = vmatpush2.msra.mxu0 0.0
        %502 = vmatprep.subr.mxu0 0.0
        %503 = vmatpush2.msra.mxu0 0.0
        %504 = vmatprep.subr.mxu0 0.0
        %505 = vmatpush2.msra.mxu0 0.0
        %506 = vmatprep.subr.mxu0 0.0
        %507 = vmatpush2.msra.mxu0 0.0
        %508 = vmatprep.subr.mxu0 0.0
        %509 = vmatpush2.msra.mxu0 0.0
        %510 = vmatprep.subr.mxu0 0.0
        %511 = vmatpush2.msra.mxu0 0.0
        %512 = vmatprep.subr.mxu0 0.0
        %513 = vmatpush2.msra.mxu0 0.0
        %514 = vmatprep.subr.mxu0 0.0
        %515 = vmatpush2.msra.mxu0 0.0
        %516 = vmatprep.subr.mxu0 0.0
        %517 = vmatpush2.msra.mxu0 0.0
        %518 = vmatprep.subr.mxu0 0.0
        %519 = vmatpush2.msra.mxu0 0.0
        %520 = vmatprep.subr.mxu0 0.0
        %521 = vmatpush2.msra.mxu0 0.0
        %522 = vmatprep.subr.mxu0 0.0
        %523 = vmatpush2.msra.mxu0 0.0
        %524 = vmatprep.subr.mxu0 0.0
        %525 = vmatpush2.msra.mxu0 0.0
        %526 = vmatprep.subr.mxu0 0.0
        %527 = vmatpush2.msra.mxu0 0.0
        %528 = vmatprep.subr.mxu0 0.0
        %529 = vmatpush2.msra.mxu0 0.0
        %530 = vmatprep.mubr.f32.mxu0 0.0
        %531 = vmatmul.mubr.f32.gmra.mxu0 %v455
        %v532 = vpop.f32.mrf.mxu0
        %v533 = vadd.f32 0.0, %v532
        %v534 = vpop.f32.mrf.mxu0
        %535 = vmatprep.mubr.f32.mxu0 0.0
        %536 = vmatmul.mubr.f32.gmra.mxu0 %v458
        %v537 = vpop.f32.mrf.mxu0
        %v538 = vadd.f32 0.0, %v537
        %v539 = vpop.f32.mrf.mxu0
        %540 = vmatprep.mubr.f32.mxu0 0.0
        %541 = vmatmul.mubr.f32.gmra.mxu0 %v461
        %v542 = vpop.f32.mrf.mxu0
        %v543 = vadd.f32 0.0, %v542
        %v544 = vpop.f32.mrf.mxu0
        %545 = vmatprep.mubr.f32.mxu0 0.0
        %546 = vmatmul.mubr.f32.gmra.mxu0 %v464
        %v547 = vpop.f32.mrf.mxu0
        %v548 = vadd.f32 0.0, %v547
        %v549 = vpop.f32.mrf.mxu0
        %550 = vdwg.mxu0
        %v552 = vsel %vm259, %v243, 0
        %v555 = vsel %vm259, %v244, 0
        %v558 = vsel %vm259, %v251, 0
        %v561 = vsel %vm259, %v252, 0
        %563 = vmatprep.subr.mxu0 0.0
        %564 = vmatpush1.msra.mxu0 0.0
        %565 = vmatprep.subr.mxu0 0.0
        %566 = vmatpush1.msra.mxu0 0.0
        %567 = vmatprep.subr.mxu0 0.0
        %568 = vmatpush1.msra.mxu0 0.0
        %569 = vmatprep.subr.mxu0 0.0
        %570 = vmatpush1.msra.mxu0 0.0
        %571 = vmatprep.subr.mxu0 0.0
        %572 = vmatpush1.msra.mxu0 0.0
        %573 = vmatprep.subr.mxu0 0.0
        %574 = vmatpush1.msra.mxu0 0.0
        %575 = vmatprep.subr.mxu0 0.0
        %576 = vmatpush1.msra.mxu0 0.0
        %577 = vmatprep.subr.mxu0 0.0
        %578 = vmatpush1.msra.mxu0 0.0
        %579 = vmatprep.subr.mxu0 0.0
        %580 = vmatpush1.msra.mxu0 0.0
        %581 = vmatprep.subr.mxu0 0.0
        %582 = vmatpush1.msra.mxu0 0.0
        %583 = vmatprep.subr.mxu0 0.0
        %584 = vmatpush1.msra.mxu0 0.0
        %585 = vmatprep.subr.mxu0 0.0
        %586 = vmatpush1.msra.mxu0 0.0
        %587 = vmatprep.subr.mxu0 0.0
        %588 = vmatpush1.msra.mxu0 0.0
        %589 = vmatprep.subr.mxu0 0.0
        %590 = vmatpush1.msra.mxu0 0.0
        %591 = vmatprep.subr.mxu0 0.0
        %592 = vmatpush1.msra.mxu0 %v256
        %593 = vmatprep.subr.mxu0 0.0
        %594 = vmatpush1.msra.mxu0 %v255
        %595 = vmatprep.subr.mxu0 0.0
        %596 = vmatpush2.msra.mxu0 0.0
        %597 = vmatprep.subr.mxu0 0.0
        %598 = vmatpush2.msra.mxu0 0.0
        %599 = vmatprep.subr.mxu0 0.0
        %600 = vmatpush2.msra.mxu0 0.0
        %601 = vmatprep.subr.mxu0 0.0
        %602 = vmatpush2.msra.mxu0 0.0
        %603 = vmatprep.subr.mxu0 0.0
        %604 = vmatpush2.msra.mxu0 0.0
        %605 = vmatprep.subr.mxu0 0.0
        %606 = vmatpush2.msra.mxu0 0.0
        %607 = vmatprep.subr.mxu0 0.0
        %608 = vmatpush2.msra.mxu0 0.0
        %609 = vmatprep.subr.mxu0 0.0
        %610 = vmatpush2.msra.mxu0 0.0
        %611 = vmatprep.subr.mxu0 0.0
        %612 = vmatpush2.msra.mxu0 0.0
        %613 = vmatprep.subr.mxu0 0.0
        %614 = vmatpush2.msra.mxu0 0.0
        %615 = vmatprep.subr.mxu0 0.0
        %616 = vmatpush2.msra.mxu0 0.0
        %617 = vmatprep.subr.mxu0 0.0
        %618 = vmatpush2.msra.mxu0 0.0
        %619 = vmatprep.subr.mxu0 0.0
        %620 = vmatpush2.msra.mxu0 0.0
        %621 = vmatprep.subr.mxu0 0.0
        %622 = vmatpush2.msra.mxu0 0.0
        %623 = vmatprep.subr.mxu0 0.0
        %624 = vmatpush2.msra.mxu0 0.0
        %625 = vmatprep.subr.mxu0 0.0
        %626 = vmatpush2.msra.mxu0 0.0
        %627 = vmatprep.mubr.f32.mxu0 0.0
        %628 = vmatmul.mubr.f32.gmra.mxu0 %v552
        %v629 = vpop.f32.mrf.mxu0
        %v630 = vadd.f32 %v533, %v629
        %v631 = vpop.f32.mrf.mxu0
        %632 = vmatprep.mubr.f32.mxu0 0.0
        %633 = vmatmul.mubr.f32.gmra.mxu0 %v555
        %v634 = vpop.f32.mrf.mxu0
        %v635 = vadd.f32 %v538, %v634
        %v636 = vpop.f32.mrf.mxu0
        %637 = vmatprep.mubr.f32.mxu0 0.0
        %638 = vmatmul.mubr.f32.gmra.mxu0 %v558
        %v639 = vpop.f32.mrf.mxu0
        %v640 = vadd.f32 %v543, %v639
        %v641 = vpop.f32.mrf.mxu0
        %642 = vmatprep.mubr.f32.mxu0 0.0
        %643 = vmatmul.mubr.f32.gmra.mxu0 %v561
        %v644 = vpop.f32.mrf.mxu0
        %v645 = vadd.f32 %v548, %v644
        %v646 = vpop.f32.mrf.mxu0
        %647 = vdwg.mxu0
        %652 = vrot.lane.b32.xlu0 %v630, 32
        %v653 = vpop.permute.xlu0 %652
        %654 = vrot.lane.b32.xlu0 %v635, 32
        %v655 = vpop.permute.xlu0 %654
        %656 = vrot.lane.b32.xlu0 %v640, 32
        %v657 = vpop.permute.xlu0 %656
        %658 = vrot.lane.b32.xlu0 %v645, 32
        %v659 = vpop.permute.xlu0 %658
        %vm664 = vcmask 261120
        %v665 = vsel %vm664, %v436, %v653
        %v666 = vsel %vm664, %v441, %v655
        %v667 = vsel %vm664, %v446, %v657
        %v668 = vsel %vm664, %v451, %v659
        %vm669 = vcmask 523264
        %670 = vst.msk [vmem:[%s236] sm:$0xff] %vm669, %v665
        %671 = vst.msk [vmem:[%s236 + $0x8] sm:$0xff] %vm669, %v666
        %672 = vst.msk [vmem:[%s236 + $0x10] sm:$0xff] %vm669, %v667
        %673 = vst.msk [vmem:[%s236 + $0x18] sm:$0xff] %vm669, %v668
        %s674 = scalar_lea.vmem %s236, 32 [#allocation8]
        %675 = vst.msk [vmem:[%s674] sm:$0xff] %vm669, %v665
        %676 = vst.msk [vmem:[%s674 + $0x8] sm:$0xff] %vm669, %v666
        %677 = vst.msk [vmem:[%s674 + $0x10] sm:$0xff] %vm669, %v667
        %678 = vst.msk [vmem:[%s674 + $0x18] sm:$0xff] %vm669, %v668
        %s679 = scalar_lea.vmem %s236, 64 [#allocation8]
        %680 = vst.msk [vmem:[%s679] sm:$0xff] %vm669, %v665
        %681 = vst.msk [vmem:[%s679 + $0x8] sm:$0xff] %vm669, %v666
        %682 = vst.msk [vmem:[%s679 + $0x10] sm:$0xff] %vm669, %v667
        %683 = vst.msk [vmem:[%s679 + $0x18] sm:$0xff] %vm669, %v668
        %s684 = scalar_lea.vmem %s236, 96 [#allocation8]
        %685 = vst.msk [vmem:[%s684] sm:$0xff] %vm669, %v665
        %686 = vst.msk [vmem:[%s684 + $0x8] sm:$0xff] %vm669, %v666
        %687 = vst.msk [vmem:[%s684 + $0x10] sm:$0xff] %vm669, %v667
        %688 = vst.msk [vmem:[%s684 + $0x18] sm:$0xff] %vm669, %v668
        %s689 = sand.u32 %s113, 1
        %s690 = scalar_lea.sflag [#allocation4], %s689
        %s691 = sand.u32 %s113, 1
        %s692 = smul.addr %s691, 128
        %s693 = scalar_lea.vmem [#allocation8], %s692
        // Predicated region
        $region45: #{tpu_custom_call.1} parent=31 // pred_check
          %p694 = pneg %p123
        $region46: #{tpu_custom_call.1} parent=31 // pred_check_branch
          %696 = sbr.rel (%p694) target = $region48
        $region47: #{tpu_custom_call.1} parent=31 // pred_region
          %s697 = smul.u32 2, %s26
          %s699 = ssub.s32 2048, 2048
          %700 = vsyncadd %s690, %s699
          %s701 = smul.addr %s697, 2
          %s702 = smul.addr %s25, 16
          %s703 = sadd.s32 %s701, %s702
          %s704 = smul.addr %s703, 128
          %s705 = scalar_lea.hbm %s3, %s704
          %s706 = sshll.u32 %s693, 4
          %s707 = int_to_ptr.vmem [resolvable:$true] %s706
          %712 = dma.vmem_to_hbm [thread:$0]  %s707, 2048, %s705, %s690, 128, 128, 8
        $region48: #{tpu_custom_call.1} parent=31 // pred_fallthru
          _
      $region32: #{tpu_custom_call.1} parent=5 // pred_fallthru
        _
      %p713 = scmp.le.s32.totalorder 2, %s16
      // Predicated region
      $region49: #{tpu_custom_call.1} parent=5 // pred_check
        %p714 = pneg %p713
      $region50: #{tpu_custom_call.1} parent=5 // pred_check_branch
        %716 = sbr.rel (%p714) target = $region52
      $region51: #{tpu_custom_call.1} parent=5 // pred_region
        %s717 = ssub.s32 %s16, 2
        // Predicated region
        $region53: #{tpu_custom_call.1} parent=51 // pred_check
          %p718 = pneg %p129
        $region54: #{tpu_custom_call.1} parent=51 // pred_check_branch
          %720 = sbr.rel (%p718) target = $region56
        $region55: #{tpu_custom_call.1} parent=51 // pred_region
          %s721 = sand.u32 %s114, 1
          %s722 = scalar_lea.sflag [#allocation4], %s721
          %s723 = sand.u32 %s114, 1
          %s724 = smul.addr %s723, 128
          %s725 = scalar_lea.vmem [#allocation8], %s724
          %726 = dma.done %s722, 2048
        $region56: #{tpu_custom_call.1} parent=51 // pred_fallthru
          _
      $region52: #{tpu_custom_call.1} parent=5 // pred_fallthru
        _
    $region6: #{tpu_custom_call.1} parent=1 // loop_footer
      %s20 = sadd.s32 1, %s16
    $region7: #{tpu_custom_call.1} parent=1 // loop_footer_branch
      %15 = sbr.rel target = $region3
    $region8: #{tpu_custom_call.1} parent=1 // loop_exit
      _
    %727 = vsyncpa [#allocation3], 1
    %s728 = scalar_lea.sflag [#allocation3], 1
    %729 = vsyncpa %s728, 1
    %730 = vsyncpa [#allocation6], 1
    %731 = vsyncpa [#allocation4], 1
    %s732 = scalar_lea.sflag [#allocation4], 1
    %733 = vsyncpa %s732, 1

</llo_original>
